<compile_context>
chip_gen: v7x
topology: tpu7x:2x2x1
jax: 0.10.0
libtpu: 0.0.40
codegen_flags: <defaults>
</compile_context>

<pallas_src>
import functools

import jax
import jax.numpy as jnp
from jax.experimental import pallas as pl
from jax.experimental.pallas import tpu as pltpu


def _round_up(x, m):
    return ((x + m - 1) // m) * m


def _pick_tile(dim, align, max_tile, min_tile=128):
    """Pick (tile, padded_dim) with tile % align == 0, tile | padded_dim.

    If the (align-rounded) dim fits in one tile, use it directly (zero extra
    padding).  Otherwise choose the tile in [min_tile, max_tile] (multiples of
    `align`) that minimizes padding waste, tie-breaking toward larger tiles.
    """
    dp = _round_up(dim, align)
    if dp <= max_tile:
        return dp, dp
    lo = _round_up(max(min_tile, align), align)
    best_t, best_pad = None, None
    for t in range(lo, max_tile + 1, align):
        padded = _round_up(dp, t)
        if best_pad is None or padded < best_pad or (padded == best_pad and t > best_t):
            best_t, best_pad = t, padded
    return best_t, best_pad


# ---------------------------------------------------------------------------
# Kernels
# ---------------------------------------------------------------------------
def _linear_kernel_single_k(x_ref, w_ref, b_ref, o_ref):
    """Full-K block: one MXU matmul + bias add, no accumulator revisit."""
    acc = jnp.dot(x_ref[...], w_ref[...], preferred_element_type=jnp.float32)
    o_ref[...] = (acc + b_ref[...]).astype(o_ref.dtype)


def _linear_kernel_multi_k(x_ref, w_ref, b_ref, o_ref, acc_ref):
    """K tiled: f32 VMEM accumulator seeded with bias; pure cast+store at end."""
    k = pl.program_id(2)

    @pl.when(k == 0)
    def _():
        # Seed the accumulator with the bias so the epilogue is cast+store only.
        acc_ref[...] = jnp.broadcast_to(b_ref[...], acc_ref.shape)

    acc_ref[...] += jnp.dot(
        x_ref[...], w_ref[...], preferred_element_type=jnp.float32
    )

    @pl.when(k == pl.num_programs(2) - 1)
    def _():
        o_ref[...] = acc_ref[...].astype(o_ref.dtype)


# ---------------------------------------------------------------------------
# Wrapper
# ---------------------------------------------------------------------------
@functools.partial(
    jax.jit, static_argnames=("max_tm", "max_tn", "max_tk", "use_bf16")
)
def linear(x, w, b, *, max_tm=512, max_tn=512, max_tk=512, use_bf16=False):
    """out = x @ w + b, x:(M,K) w:(K,N) b:(N,)."""
    M, K = x.shape
    K2, N = w.shape
    assert K == K2 and b.shape == (N,)
    out_dtype = x.dtype

    # Tile selection: minimal padding, MXU/lane aligned, VMEM-safe caps.
    tm, Mp = _pick_tile(M, 8, max_tm)
    tn, Np = _pick_tile(N, 128, max_tn)
    tk, Kp = _pick_tile(K, 128, max_tk)

    # v7x megacore guard: ensure at least one "parallel" axis has >= 2 blocks.
    if Mp // tm == 1 and Np // tn == 1 and tn % 256 == 0:
        tn //= 2

    in_dtype = jnp.bfloat16 if use_bf16 else x.dtype
    # NOTE: in production, pre-pad/cast the constant weight & bias once outside
    # the forward call; here we only pad when the shape actually requires it.
    xp = x.astype(in_dtype)
    wp = w.astype(in_dtype)
    if (Mp, Kp) != (M, K):
        xp = jnp.pad(xp, ((0, Mp - M), (0, Kp - K)))
    if (Kp, Np) != (K, N):
        wp = jnp.pad(wp, ((0, Kp - K), (0, Np - N)))
    bp = (b if Np == N else jnp.pad(b, (0, Np - N)))
    bp = bp.astype(jnp.float32).reshape(1, Np)

    n_m, n_n, n_k = Mp // tm, Np // tn, Kp // tk
    dsize = jnp.dtype(in_dtype).itemsize
    cost = pl.CostEstimate(
        flops=2 * Mp * Np * Kp,
        bytes_accessed=(
            Mp * Kp * dsize * n_n            # x re-read once per N block
            + Kp * Np * dsize * n_m          # w re-read once per M block
            + Mp * Np * jnp.dtype(out_dtype).itemsize
            + 4 * Np
        ),
        transcendentals=0,
    )

    if n_k == 1:
        # K fits in one tile: no K grid axis, no accumulator scratch.
        out_p = pl.pallas_call(
            _linear_kernel_single_k,
            out_shape=jax.ShapeDtypeStruct((Mp, Np), out_dtype),
            grid_spec=pltpu.PrefetchScalarGridSpec(
                num_scalar_prefetch=0,
                grid=(n_m, n_n),
                in_specs=[
                    pl.BlockSpec((tm, Kp), lambda i, j: (i, 0)),
                    pl.BlockSpec((Kp, tn), lambda i, j: (0, j)),
                    pl.BlockSpec((1, tn), lambda i, j: (0, j)),
                ],
                out_specs=pl.BlockSpec((tm, tn), lambda i, j: (i, j)),
            ),
            compiler_params=pltpu.CompilerParams(
                dimension_semantics=("parallel", "parallel"),
            ),
            cost_estimate=cost,
        )(xp, wp, bp)
    else:
        out_p = pl.pallas_call(
            _linear_kernel_multi_k,
            out_shape=jax.ShapeDtypeStruct((Mp, Np), out_dtype),
            grid_spec=pltpu.PrefetchScalarGridSpec(
                num_scalar_prefetch=0,
                grid=(n_m, n_n, n_k),  # K last: reduction axis
                in_specs=[
                    pl.BlockSpec((tm, tk), lambda i, j, k: (i, k)),
                    pl.BlockSpec((tk, tn), lambda i, j, k: (k, j)),
                    pl.BlockSpec((1, tn), lambda i, j, k: (0, j)),
                ],
                out_specs=pl.BlockSpec((tm, tn), lambda i, j, k: (i, j)),
                scratch_shapes=[pltpu.VMEM((tm, tn), jnp.float32)],
            ),
            compiler_params=pltpu.CompilerParams(
                dimension_semantics=("parallel", "parallel", "arbitrary"),
            ),
            cost_estimate=cost,
        )(xp, wp, bp)

    if (Mp, Np) != (M, N):
        out_p = out_p[:M, :N]
    return out_p


# ---------------------------------------------------------------------------
# Self-test
# ---------------------------------------------------------------------------
if __name__ == "__main__":
    key = jax.random.PRNGKey(0)

    # --- Case 1: small shapes implied by the module (single-K path) ---------
    k_x, k_w, k_b = jax.random.split(key, 3)
    batch, in_features, out_features = 8, 32, 64
    x = jax.random.normal(k_x, (batch, in_features), dtype=jnp.float32)
    w = jax.random.normal(k_w, (in_features, out_features), dtype=jnp.float32)
    b = jax.random.normal(k_b, (out_features,), dtype=jnp.float32)

    out = jax.block_until_ready(linear(x, w, b))
    ref = x @ w + b[None, :]
    assert out.shape == (batch, out_features)
    assert jnp.allclose(out, ref, atol=1e-5, rtol=1e-5)

    # --- Case 2: non-tile-multiple shapes (padding + tiled-K accumulator) ---
    k_x2, k_w2, k_b2 = jax.random.split(jax.random.PRNGKey(1), 3)
    M2, K2, N2 = 300, 600, 260
    x2 = jax.random.normal(k_x2, (M2, K2), dtype=jnp.float32)
    w2 = jax.random.normal(k_w2, (K2, N2), dtype=jnp.float32)
    b2 = jax.random.normal(k_b2, (N2,), dtype=jnp.float32)

    out2 = jax.block_until_ready(linear(x2, w2, b2))
    ref2 = x2 @ w2 + b2[None, :]
    assert out2.shape == (M2, N2)
    assert jnp.allclose(out2, ref2, atol=1e-3, rtol=1e-3)

    # --- Case 3: multi-block M/N/K grid (512-tiles, parallel M/N axes) ------
    k_x3, k_w3, k_b3 = jax.random.split(jax.random.PRNGKey(2), 3)
    M3, K3, N3 = 1024, 1024, 1024
    x3 = jax.random.normal(k_x3, (M3, K3), dtype=jnp.float32)
    w3 = jax.random.normal(k_w3, (K3, N3), dtype=jnp.float32)
    b3 = jax.random.normal(k_b3, (N3,), dtype=jnp.float32)

    out3 = jax.block_until_ready(linear(x3, w3, b3))
    ref3 = x3 @ w3 + b3[None, :]
    assert out3.shape == (M3, N3)
    assert jnp.allclose(out3, ref3, atol=2e-2, rtol=2e-2)

    print("KERNEL_OK")
</pallas_src>

<mosaic_0001>
module attributes {stable_mosaic.version = 11 : i64} {
  func.func @_linear_kernel_single_k(%arg0: i32, %arg1: i32, %arg2: memref<8x128xf32, #tpu.memory_space<vmem>>, %arg3: memref<128x128xf32, #tpu.memory_space<vmem>>, %arg4: memref<1x128xf32, #tpu.memory_space<vmem>>, %arg5: memref<8x128xf32, #tpu.memory_space<vmem>>) attributes {dimension_semantics = [#tpu.dimension_semantics<parallel>, #tpu.dimension_semantics<parallel>], iteration_bounds = array<i64: 1, 1>, scalar_prefetch = 0 : i64, scratch_operands = 0 : i64, tpu.core_type = #tpu.core_type<tc>, window_params = [{transform_indices = @transform_0, window_bounds = array<i64: 8, 128>}, {transform_indices = @transform_1, window_bounds = array<i64: 128, 128>}, {transform_indices = @transform_2, window_bounds = array<i64: 1, 128>}, {transform_indices = @transform_3, window_bounds = array<i64: 8, 128>}]} {
    %c0 = arith.constant 0 : index
    %c0_0 = arith.constant 0 : index
    %0 = vector.load %arg2[%c0, %c0_0] : memref<8x128xf32, #tpu.memory_space<vmem>>, vector<8x128xf32>
    %c0_1 = arith.constant 0 : index
    %c0_2 = arith.constant 0 : index
    %1 = vector.load %arg3[%c0_1, %c0_2] : memref<128x128xf32, #tpu.memory_space<vmem>>, vector<128x128xf32>
    %cst = arith.constant dense<0.000000e+00> : vector<8x128xf32>
    %2 = tpu.matmul %0, %1, %cst {dimension_numbers = #tpu.dot_dimension_numbers<[1], [0], [0], [1], [0, 0, 1, 1], [], []>} : vector<8x128xf32>, vector<128x128xf32>, vector<8x128xf32> -> vector<8x128xf32>
    %c0_3 = arith.constant 0 : index
    %c0_4 = arith.constant 0 : index
    %3 = vector.load %arg4[%c0_3, %c0_4] : memref<1x128xf32, #tpu.memory_space<vmem>>, vector<1x128xf32>
    %4 = vector.broadcast %3 : vector<1x128xf32> to vector<8x128xf32>
    %5 = arith.addf %2, %4 : vector<8x128xf32>
    %c0_5 = arith.constant 0 : index
    %c0_6 = arith.constant 0 : index
    %6 = vector.load %arg5[%c0_5, %c0_6] : memref<8x128xf32, #tpu.memory_space<vmem>>, vector<8x128xf32>
    tpu.vector_store %arg5[%c0_5, %c0_6], %5 {strides = array<i32>} : memref<8x128xf32, #tpu.memory_space<vmem>>, vector<8x128xf32>,
    return
  }
  func.func @transform_0(%arg0: i32, %arg1: i32) -> (i32, i32) {
    %c0_i32 = arith.constant 0 : i32
    %c0_i32_0 = arith.constant 0 : i32
    return %arg0, %c0_i32 : i32, i32
  }
  func.func @transform_1(%arg0: i32, %arg1: i32) -> (i32, i32) {
    %c0_i32 = arith.constant 0 : i32
    %c0_i32_0 = arith.constant 0 : i32
    return %c0_i32, %arg1 : i32, i32
  }
  func.func @transform_2(%arg0: i32, %arg1: i32) -> (i32, i32) {
    %c0_i32 = arith.constant 0 : i32
    %c0_i32_0 = arith.constant 0 : i32
    return %c0_i32, %arg1 : i32, i32
  }
  func.func @transform_3(%arg0: i32, %arg1: i32) -> (i32, i32) {
    %c0_i32 = arith.constant 0 : i32
    return %arg0, %arg1 : i32, i32
  }
}

</mosaic_0001>

<llo_original>
// kernel: linear.1
$region0: #{linear.1}
  #allocation0 [shape = 'u32[]', space=smem, size = 0x4, offset = 0x4, fixed_abs, tag = 'smem constant byte address 0x4 - core index']
  #allocation1 [shape = 'u32[144,128]{1,0:T(1,128)}', space=vmem, size = 0x12000, scoped, tag = 'internal scratch']
  %s0 = inlined_call_operand.vmem [shape: f32[8,128], index: 0, kind: input, shape index: {}]
  %s1 = inlined_call_operand.vmem [shape: f32[128,128], index: 1, kind: input, shape index: {}]
  %s2 = inlined_call_operand.vmem [shape: f32[1,128], index: 2, kind: input, shape index: {}]
  %s3 = inlined_call_operand.hbm [shape: f32[8,128], index: 3, kind: output, shape index: {}]
  %s4 = sld [smem:[#allocation0]]
  $region22: #{linear.1} parent=0
    _
  %s6 = ssub.s32 1, %s4
  %s7 = scalar_select 0, %s6, %s4
  $region1: #{linear.1} parent=0
    #allocation2 [shape = 'u8[4096]{0}', space=vmem, size = 0x1000, scoped, tag = 'output window, operand 0, single buffered']
    #allocation3 [shape = 's32[1]{0}', space=sflag, size = 0x4, scoped, tag = 'scoped memory for linear.1']
    %8 = vsyncpa [#allocation3], 0
    // Predicated region
    $region2: #{linear.1} parent=1 // pred_check
      _
    $region3: #{linear.1} parent=1 // pred_check_branch
      %10 = sbr.rel (0) target = $region5
    $region4: #{linear.1} parent=1 // pred_region
      _
    $region5: #{linear.1} parent=1 // pred_fallthru
      _
    // Predicated region
    $region6: #{linear.1} parent=1 // pred_check
      _
    $region7: #{linear.1} parent=1 // pred_check_branch
      %12 = sbr.rel (0) target = $region9
    $region8: #{linear.1} parent=1 // pred_region
      _
    $region9: #{linear.1} parent=1 // pred_fallthru
      _
    // Predicated region
    $region10: #{linear.1} parent=1 // pred_check
      _
    $region11: #{linear.1} parent=1 // pred_check_branch
      %14 = sbr.rel (0) target = $region13
    $region12: #{linear.1} parent=1 // pred_region
      _
    $region13: #{linear.1} parent=1 // pred_fallthru
      _
    %v15 = vld [vmem:[%s0] sm:$0xff]
    %v16 = vld [vmem:[%s1] sm:$0xff]
    %v17 = vld [vmem:[%s1 + $0x8] sm:$0xff]
    %v18 = vld [vmem:[%s1 + $0x10] sm:$0xff]
    %v19 = vld [vmem:[%s1 + $0x18] sm:$0xff]
    %v20 = vld [vmem:[%s1 + $0x20] sm:$0xff]
    %v21 = vld [vmem:[%s1 + $0x28] sm:$0xff]
    %v22 = vld [vmem:[%s1 + $0x30] sm:$0xff]
    %v23 = vld [vmem:[%s1 + $0x38] sm:$0xff]
    %v24 = vld [vmem:[%s1 + $0x40] sm:$0xff]
    %v25 = vld [vmem:[%s1 + $0x48] sm:$0xff]
    %v26 = vld [vmem:[%s1 + $0x50] sm:$0xff]
    %v27 = vld [vmem:[%s1 + $0x58] sm:$0xff]
    %v28 = vld [vmem:[%s1 + $0x60] sm:$0xff]
    %v29 = vld [vmem:[%s1 + $0x68] sm:$0xff]
    %v30 = vld [vmem:[%s1 + $0x70] sm:$0xff]
    %v31 = vld [vmem:[%s1 + $0x78] sm:$0xff]
    %v32 = vld [vmem:[%s2] sm:$0x1]
    %v34 = vlaneseq
    %v35 = vshrl.u32 %v34, 7
    %v36 = vsub.s32 0, %v35
    %v37 = vrot.slane %v32, %v36
    %39 = vmatprep.subr.mxu0 0.0
    %40 = vmatpush1.msra.mxu0 %v16
    %41 = vmatprep.subr.mxu0 0.0
    %42 = vmatpush1.msra.mxu0 %v17
    %43 = vmatprep.subr.mxu0 0.0
    %44 = vmatpush1.msra.mxu0 %v18
    %45 = vmatprep.subr.mxu0 0.0
    %46 = vmatpush1.msra.mxu0 %v19
    %47 = vmatprep.subr.mxu0 0.0
    %48 = vmatpush1.msra.mxu0 %v20
    %49 = vmatprep.subr.mxu0 0.0
    %50 = vmatpush1.msra.mxu0 %v21
    %51 = vmatprep.subr.mxu0 0.0
    %52 = vmatpush1.msra.mxu0 %v22
    %53 = vmatprep.subr.mxu0 0.0
    %54 = vmatpush1.msra.mxu0 %v23
    %55 = vmatprep.subr.mxu0 0.0
    %56 = vmatpush1.msra.mxu0 %v24
    %57 = vmatprep.subr.mxu0 0.0
    %58 = vmatpush1.msra.mxu0 %v25
    %59 = vmatprep.subr.mxu0 0.0
    %60 = vmatpush1.msra.mxu0 %v26
    %61 = vmatprep.subr.mxu0 0.0
    %62 = vmatpush1.msra.mxu0 %v27
    %63 = vmatprep.subr.mxu0 0.0
    %64 = vmatpush1.msra.mxu0 %v28
    %65 = vmatprep.subr.mxu0 0.0
    %66 = vmatpush1.msra.mxu0 %v29
    %67 = vmatprep.subr.mxu0 0.0
    %68 = vmatpush1.msra.mxu0 %v30
    %69 = vmatprep.subr.mxu0 0.0
    %70 = vmatpush1.msra.mxu0 %v31
    %71 = vmatprep.subr.mxu0 0.0
    %72 = vmatpush1.msra.mxu0 0.0
    %73 = vmatprep.subr.mxu0 0.0
    %74 = vmatpush1.msra.mxu0 0.0
    %75 = vmatprep.subr.mxu0 0.0
    %76 = vmatpush1.msra.mxu0 0.0
    %77 = vmatprep.subr.mxu0 0.0
    %78 = vmatpush1.msra.mxu0 0.0
    %79 = vmatprep.subr.mxu0 0.0
    %80 = vmatpush1.msra.mxu0 0.0
    %81 = vmatprep.subr.mxu0 0.0
    %82 = vmatpush1.msra.mxu0 0.0
    %83 = vmatprep.subr.mxu0 0.0
    %84 = vmatpush1.msra.mxu0 0.0
    %85 = vmatprep.subr.mxu0 0.0
    %86 = vmatpush1.msra.mxu0 0.0
    %87 = vmatprep.subr.mxu0 0.0
    %88 = vmatpush1.msra.mxu0 0.0
    %89 = vmatprep.subr.mxu0 0.0
    %90 = vmatpush1.msra.mxu0 0.0
    %91 = vmatprep.subr.mxu0 0.0
    %92 = vmatpush1.msra.mxu0 0.0
    %93 = vmatprep.subr.mxu0 0.0
    %94 = vmatpush1.msra.mxu0 0.0
    %95 = vmatprep.subr.mxu0 0.0
    %96 = vmatpush1.msra.mxu0 0.0
    %97 = vmatprep.subr.mxu0 0.0
    %98 = vmatpush1.msra.mxu0 0.0
    %99 = vmatprep.subr.mxu0 0.0
    %100 = vmatpush1.msra.mxu0 0.0
    %101 = vmatprep.subr.mxu0 0.0
    %102 = vmatpush1.msra.mxu0 0.0
    %103 = vmatprep.mubr.f32.mxu0 0.0
    %104 = vmatmul.mubr.f32.gmra.mrb[0].mxu0 %v15
    %v105 = vpop.f32.mrb[0].mxu0
    %v106 = vadd.f32 %v37, %v105
    %v107 = vpop.f32.mrb[0].mxu0
    %108 = vdwg.mxu0
    %109 = vst [vmem:[#allocation2] sm:$0xff] %v106
    // Predicated region
    $region14: #{linear.1} parent=1 // pred_check
      _
    $region15: #{linear.1} parent=1 // pred_check_branch
      %111 = sbr.rel (0) target = $region17
    $region16: #{linear.1} parent=1 // pred_region
      %s113 = ssub.s32 128, 128
      %114 = vsyncadd [#allocation3], %s113
      %s116 = sshll.u32 [#allocation2], 4
      %s117 = int_to_ptr.vmem [resolvable:$true] %s116
      %119 = dma.vmem_to_hbm [thread:$0]  %s117, 128, %s3, [#allocation3]
    $region17: #{linear.1} parent=1 // pred_fallthru
      _
    // Predicated region
    $region18: #{linear.1} parent=1 // pred_check
      _
    $region19: #{linear.1} parent=1 // pred_check_branch
      %121 = sbr.rel (0) target = $region21
    $region20: #{linear.1} parent=1 // pred_region
      %122 = dma.done [#allocation3], 128
    $region21: #{linear.1} parent=1 // pred_fallthru
      _
    %123 = vsyncpa [#allocation3], 1

</llo_original>
